<compile_context>
chip_gen: v5e
topology: v5e:2x2
jax: 0.10.0
libtpu: 0.0.40
codegen_flags: <defaults>
</compile_context>

<pallas_src>
import functools

import jax
import jax.numpy as jnp
from jax.experimental import pallas as pl
from jax.experimental.pallas import tpu as pltpu


_LANE = 128                       # lane width: pad last dims to multiples
_SUBLANE = 8                      # f32 sublane width
_BF16_SUBLANE = 16                # bf16 packed sublane width (reshape alignment)
_NEG_INF = jnp.float32(-1e9)
# Per-buffer cap for keeping the whole bf16 weight stack resident in VMEM
# (double-buffered allocation => ~2x this; safe on v5e/v6e/v7x budgets).
_RESIDENT_W_BYTES = 6 * 1024 * 1024


def _round_up(x, m):
    return (x + m - 1) // m * m


def _pick_vmem_limit():
    """Per-generation scoped-VMEM limit (~3/4 of physical VMEM):
    ~96 MiB on v5e/v6e (128 MiB), ~48 MiB on v7x (64 MiB); 64 MiB fallback."""
    try:
        cap = getattr(pltpu.get_tpu_info(), "vmem_capacity_bytes", None)
        if cap:
            return int(min(cap * 3 // 4, 100 * 1024 * 1024))
    except Exception:
        pass
    return 64 * 1024 * 1024


_VMEM_LIMIT = _pick_vmem_limit()


# ---------------------------------------------------------------------------
# Kernel 1: fused L-layer MLP stack   h_{l+1} = tanh(h_l @ W_l + b_l)
#   grid = (row_tiles, L); activation carried in a bf16 VMEM scratch across
#   layers; weights either VMEM-resident (constant index_map => single DMA)
#   or streamed per layer.
# ---------------------------------------------------------------------------
def _mlp_stack_kernel(emit_all, resident, x_ref, w_ref, b_ref, out_ref, act_ref):
    l = pl.program_id(1)

    @pl.when(l == 0)
    def _():
        act_ref[...] = x_ref[...]                      # bf16 copy of the input tile

    if resident:
        w = w_ref[l]                                   # (Dp, Dp) bf16, VMEM-resident stack
        bias = b_ref[l]                                # (1, Dp)  f32
    else:
        w = w_ref[0]
        bias = b_ref[0]

    y = jnp.dot(act_ref[...], w, preferred_element_type=jnp.float32)
    h = jnp.tanh(y + bias)                             # f32 elementwise (v5e-safe)
    hb = h.astype(jnp.bfloat16)
    act_ref[...] = hb                                  # bf16 carried activation

    if emit_all:
        out_ref[0] = hb                                # every layer (distillation path)
    else:
        @pl.when(l == pl.num_programs(1) - 1)
        def _():
            out_ref[0] = hb                            # final layer only


def pallas_mlp_stack(x_bm, w_stack, b_stack, *, emit_intermediates=True,
                     tile_rows=512):
    """x_bm: (B, T, Dp) bf16 (D already lane-padded); w_stack: (L, Dp, Dp) bf16;
    b_stack: (L, 1, Dp) f32.  Returns (L or 1, B, T, Dp) bf16."""
    B, T, Dp = x_bm.shape
    L = w_stack.shape[0]
    N = B * T
    tile = min(tile_rows, _round_up(N, _SUBLANE))       # rows per grid step
    Np = _round_up(N, tile)

    x2d = jnp.pad(x_bm.reshape(N, Dp), ((0, Np - N), (0, 0)))

    w_bytes = w_stack.size * w_stack.dtype.itemsize
    resident = w_bytes <= _RESIDENT_W_BYTES             # gate: full stack in VMEM
    if resident:
        # Constant index_map => the whole stack is DMA'd once (block index never
        # changes), eliminating per-row-tile weight re-streaming.
        w_spec = pl.BlockSpec((L, Dp, Dp), lambda i, l: (0, 0, 0))
        b_spec = pl.BlockSpec((L, 1, Dp), lambda i, l: (0, 0, 0))
    else:
        w_spec = pl.BlockSpec((1, Dp, Dp), lambda i, l: (l, 0, 0))
        b_spec = pl.BlockSpec((1, 1, Dp), lambda i, l: (l, 0, 0))

    n_out = L if emit_intermediates else 1
    if emit_intermediates:
        out_spec = pl.BlockSpec((1, tile, Dp), lambda i, l: (l, i, 0))
    else:
        out_spec = pl.BlockSpec((1, tile, Dp), lambda i, l: (0, i, 0))

    out = pl.pallas_call(
        functools.partial(_mlp_stack_kernel, emit_intermediates, resident),
        out_shape=jax.ShapeDtypeStruct((n_out, Np, Dp), jnp.bfloat16),
        grid_spec=pltpu.PrefetchScalarGridSpec(
            num_scalar_prefetch=0,
            grid=(Np // tile, L),
            in_specs=[
                pl.BlockSpec((tile, Dp), lambda i, l: (i, 0)),   # x (read @ l=0)
                w_spec,
                b_spec,
            ],
            out_specs=out_spec,
            scratch_shapes=[pltpu.VMEM((tile, Dp), jnp.bfloat16)],
        ),
        compiler_params=pltpu.CompilerParams(
            dimension_semantics=("parallel", "arbitrary"),
            vmem_limit_bytes=_VMEM_LIMIT),
    )(x2d, w_stack, b_stack)

    return out[:, :N, :].reshape(n_out, B, T, Dp)


# ---------------------------------------------------------------------------
# Kernel 2: batched masked global attention + fused output projection.
#   grid = (batch_blocks, T_blocks);  out = tanh(ctx @ Wo_c + h @ Wo_h + bo)
# ---------------------------------------------------------------------------
def _attention_kernel(emit_raw, h_ref, m_ref, bias_ref, wc_ref, wh_ref, bo_ref,
                      *out_refs):
    out_ref, attn_ref = out_refs[0], out_refs[1]

    hb = h_ref[...]                                    # (Bb, Tt, Dp) bf16
    mb = m_ref[...]                                    # (Bb, Sp, Dp) bf16

    # unnormalized scores (contract last axes, f32 accumulation)
    scores = jnp.einsum('btd,bsd->bts', hb, mb,
                        preferred_element_type=jnp.float32)   # (Bb, Tt, Sp)

    # additive length mask (0 valid / -1e9 padded), exact softmax over source
    masked = scores + bias_ref[...]                    # bias: (Bb, 1, Sp)
    mx = jnp.max(masked, axis=-1, keepdims=True)
    e = jnp.exp(masked - mx)
    denom = jnp.sum(e, axis=-1, keepdims=True)
    p = e * (jnp.float32(1.0) / denom)                 # exact: attns are external outputs

    ctx = jnp.einsum('bts,bsd->btd', p.astype(jnp.bfloat16), mb,
                     preferred_element_type=jnp.float32)      # (Bb, Tt, Dp)

    Bb, Tt, Dp = hb.shape
    ctx2 = ctx.reshape(Bb * Tt, Dp).astype(jnp.bfloat16)
    h2 = hb.reshape(Bb * Tt, Dp)                       # Tt is 16-aligned => no relayout
    proj = (jnp.dot(ctx2, wc_ref[...], preferred_element_type=jnp.float32)
            + jnp.dot(h2, wh_ref[...], preferred_element_type=jnp.float32))
    out = jnp.tanh(proj + bo_ref[...]).reshape(Bb, Tt, Dp)

    out_ref[...] = out.astype(out_ref.dtype)
    attn_ref[...] = p.astype(attn_ref.dtype)
    if emit_raw:
        out_refs[2][...] = scores.astype(out_refs[2].dtype)


def pallas_attention(dech_bm, mem_bm, lengths, d_model, wo_c, wo_h, bo, *,
                     emit_raw=True, batch_block=4, t_block=128):
    """dech_bm: (B, T, Dp) bf16; mem_bm: (B, S, Dp) bf16 (D lane-padded);
    lengths: (B,) int32; wo_c/wo_h: (Dp, Dp) bf16; bo: (1, Dp) f32."""
    B, T, Dp = dech_bm.shape
    S = mem_bm.shape[1]
    Sp = _round_up(S, _LANE)
    Bb = min(batch_block, B)
    Bp = _round_up(B, Bb)
    # Tt multiple of 16 keeps bf16 reshapes tile-aligned; t_block tiling also
    # guarantees >1 grid step for megacore / pipelining when B is small.
    Tt = min(t_block, _round_up(T, _BF16_SUBLANE))
    Tp = _round_up(T, Tt)

    h = jnp.pad(dech_bm, ((0, Bp - B), (0, Tp - T), (0, 0)))
    m = jnp.pad(mem_bm, ((0, Bp - B), (0, Sp - S), (0, 0)))
    len_p = jnp.pad(lengths.astype(jnp.int32), (0, Bp - B))
    bias = jnp.where(jnp.arange(Sp)[None, :] < len_p[:, None],
                     jnp.float32(0.0), _NEG_INF)[:, None, :]   # (Bp, 1, Sp)

    out_shapes = [jax.ShapeDtypeStruct((Bp, Tp, Dp), jnp.float32),
                  jax.ShapeDtypeStruct((Bp, Tp, Sp), jnp.bfloat16)]
    out_specs = [pl.BlockSpec((Bb, Tt, Dp), lambda b, t: (b, t, 0)),
                 pl.BlockSpec((Bb, Tt, Sp), lambda b, t: (b, t, 0))]
    if emit_raw:
        out_shapes.append(jax.ShapeDtypeStruct((Bp, Tp, Sp), jnp.bfloat16))
        out_specs.append(pl.BlockSpec((Bb, Tt, Sp), lambda b, t: (b, t, 0)))

    results = pl.pallas_call(
        functools.partial(_attention_kernel, emit_raw),
        out_shape=tuple(out_shapes),
        grid=(Bp // Bb, Tp // Tt),
        in_specs=[
            pl.BlockSpec((Bb, Tt, Dp), lambda b, t: (b, t, 0)),   # dec hidden
            pl.BlockSpec((Bb, Sp, Dp), lambda b, t: (b, 0, 0)),   # memory bank (const over t)
            pl.BlockSpec((Bb, 1, Sp), lambda b, t: (b, 0, 0)),    # mask bias
            pl.BlockSpec((Dp, Dp), lambda b, t: (0, 0)),          # Wo_c
            pl.BlockSpec((Dp, Dp), lambda b, t: (0, 0)),          # Wo_h
            pl.BlockSpec((1, Dp), lambda b, t: (0, 0)),           # bo
        ],
        out_specs=tuple(out_specs),
        compiler_params=pltpu.CompilerParams(
            dimension_semantics=("parallel", "parallel"),
            vmem_limit_bytes=_VMEM_LIMIT),
    )(h, m, bias, wo_c, wo_h, bo)
    # TODO(synk): for very long S, switch to an online-softmax (flash-style)
    # loop over S tiles so (Bb,Tt,Sp) score tensors never live whole in VMEM.

    out = results[0][:B, :T, :d_model]
    attn = results[1][:B, :T, :S]
    raw = results[2][:B, :T, :S] if emit_raw else None
    return out, attn, raw


# ---------------------------------------------------------------------------
# NMTModel forward (JAX glue around the Pallas kernels)
# ---------------------------------------------------------------------------

def _stack_internals(tensor_list, step=1, distill_mode=None):
    # Faithful port of NMTModel._stack_internals for the modes used here
    # (step=1, mode None or 'skip' -> identity / strided slice).
    if distill_mode == 'skip':
        return tensor_list[step - 1::step]
    if distill_mode is None:
        return tensor_list[step - 1::step]
    raise NotImplementedError(distill_mode)
    # TODO(synk): other distill modes (regular_comb/overlap/...) are pure
    # host-side list/concat bookkeeping, not kernel compute.


def init_params(key, vocab, hidden, num_layers):
    keys = jax.random.split(key, 6)
    s = 0.1
    return {
        'enc_emb': jax.random.normal(keys[0], (vocab, hidden), jnp.float32) * s,
        'dec_emb': jax.random.normal(keys[1], (vocab, hidden), jnp.float32) * s,
        'wo_c': jax.random.normal(keys[2], (hidden, hidden), jnp.float32) * s,
        'wo_h': jax.random.normal(keys[3], (hidden, hidden), jnp.float32) * s,
        'bo': jnp.zeros((1, hidden), jnp.float32),
        'enc_w': jax.random.normal(keys[4], (num_layers, hidden, hidden),
                                   jnp.float32) * s,
        'enc_b': jnp.zeros((num_layers, hidden), jnp.float32),
        'dec_w': jax.random.normal(keys[5], (num_layers, hidden, hidden),
                                   jnp.float32) * s,
        'dec_b': jnp.zeros((num_layers, hidden), jnp.float32),
    }


def prepare_params(raw, hidden):
    """Pad & cast parameters ONCE (not per forward step): weights/embeddings ->
    lane-padded bf16, biases -> lane-padded f32.  Removes O(L*D^2) convert/pad
    XLA ops from the per-step critical path before kernel launch."""
    D = hidden
    Dp = _round_up(D, _LANE)
    pad_rc = ((0, Dp - D), (0, Dp - D))

    def pad_emb(e):
        return jnp.pad(e, ((0, 0), (0, Dp - D))).astype(jnp.bfloat16)

    def pad_w_stack(w):
        return jnp.pad(w, ((0, 0),) + pad_rc).astype(jnp.bfloat16)

    def pad_b_stack(b):
        return jnp.pad(b, ((0, 0), (0, Dp - D))).astype(jnp.float32)[:, None, :]

    return {
        'hidden': D,                                    # static (not jitted over)
        'enc_emb': pad_emb(raw['enc_emb']),
        'dec_emb': pad_emb(raw['dec_emb']),
        'enc_w': pad_w_stack(raw['enc_w']),
        'enc_b': pad_b_stack(raw['enc_b']),
        'dec_w': pad_w_stack(raw['dec_w']),
        'dec_b': pad_b_stack(raw['dec_b']),
        'wo_c': jnp.pad(raw['wo_c'], pad_rc).astype(jnp.bfloat16),
        'wo_h': jnp.pad(raw['wo_h'], pad_rc).astype(jnp.bfloat16),
        'bo': jnp.pad(raw['bo'], ((0, 0), (0, Dp - D))).astype(jnp.float32),
    }


def nmt_forward(params, src, tgt, lengths, bptt=False, with_align=False,
                need_unnormalized_attns=True, need_intermediates=True):
    """Matches NMTModel.forward semantics (no distillation / no queues).
    need_intermediates=False emits only the final layer from each stack
    (cuts the MLP kernels' HBM writeback by L x when distillation outputs
    are not consumed)."""
    D = params['hidden']
    dec_in = tgt[:-1]                                     # (tgt_len-1, B)

    # ---------------- encoder (batch-major, fused layer stack) --------------
    S, B = src.shape
    x = jnp.take(params['enc_emb'], src.T, axis=0)        # (B, S, Dp) bf16 glue
    enc_stack = pallas_mlp_stack(x, params['enc_w'], params['enc_b'],
                                 emit_intermediates=need_intermediates)
    memory_bank = enc_stack[-1]                           # (B, S, Dp) bf16, stays padded
    enc_intermediate = [enc_stack[l][:, :, :D] for l in range(enc_stack.shape[0])]

    # enc_state: length-masked mean over time (small glue reduction, f32)
    mask = (jnp.arange(S)[None, :] < lengths[:, None]).astype(jnp.float32)
    mem_f = enc_intermediate[-1].astype(jnp.float32)
    enc_state = ((mem_f * mask[:, :, None]).sum(1)
                 / jnp.maximum(lengths[:, None].astype(jnp.float32), 1.0))

    enc_attns = []                                        # simple encoder: none

    # ---------------- decoder (batch-major, fused layer stack) --------------
    Td = dec_in.shape[0]
    xd = jnp.take(params['dec_emb'], dec_in.T, axis=0)    # (B, Td, Dp) bf16 glue
    dec_stack = pallas_mlp_stack(xd, params['dec_w'], params['dec_b'],
                                 emit_intermediates=need_intermediates)
    hd = dec_stack[-1]                                    # (B, Td, Dp) bf16
    dec_intermediate = [dec_stack[l][:, :, :D] for l in range(dec_stack.shape[0])]

    # global attention over memory bank (Pallas kernel, batch-major layout;
    # raw scores only emitted when the caller wants unnormalized_attns)
    out_b, attn_b, raw_b = pallas_attention(
        hd, memory_bank, lengths.astype(jnp.int32), D,
        params['wo_c'], params['wo_h'], params['bo'],
        emit_raw=need_unnormalized_attns)

    # only the externally specified outputs go back to OpenNMT time-major
    dec_out = jnp.transpose(out_b, (1, 0, 2))             # (Td, B, D) f32
    attn_std = jnp.transpose(attn_b, (1, 0, 2))           # (Td, B, S) bf16
    attns = {'std': attn_std}
    dec_state = hd[:, -1, :D].astype(jnp.float32)         # (B, D)

    unnormalized_attns = ([jnp.transpose(raw_b, (1, 0, 2))]
                          if need_unnormalized_attns else [])
    dec_attns = [attn_std]

    # intermediates kept batch-major (B, len, D); only distillation consumes them.
    enc_intermediate = _stack_internals(enc_intermediate, 1, None)
    dec_intermediate = _stack_internals(dec_intermediate, 1, None)
    unnormalized_attns = _stack_internals(unnormalized_attns, 1, 'skip')
    enc_attns = _stack_internals(enc_attns, 1, 'skip')
    dec_attns = _stack_internals(dec_attns, 1, 'skip')

    return (dec_out, attns, enc_state, dec_state, enc_intermediate,
            dec_intermediate, unnormalized_attns, enc_attns, dec_attns)


# ---------------------------------------------------------------------------

if __name__ == "__main__":
    VOCAB, HIDDEN, LAYERS = 16, 32, 2
    SRC_LEN, TGT_LEN, BATCH = 8, 8, 2

    key = jax.random.PRNGKey(0)
    k_src, k_tgt, k_par = jax.random.split(key, 3)

    src = jax.random.randint(k_src, (SRC_LEN, BATCH), 0, VOCAB, jnp.int32)
    tgt = jax.random.randint(k_tgt, (TGT_LEN, BATCH), 0, VOCAB, jnp.int32)
    lengths = jnp.array([SRC_LEN, SRC_LEN - 2], jnp.int32)

    params = prepare_params(init_params(k_par, VOCAB, HIDDEN, LAYERS), HIDDEN)

    # Full-fidelity path (all intermediates + unnormalized attn scores).
    outs = nmt_forward(params, src, tgt, lengths)
    jax.block_until_ready(outs[0])           # dec_out (TGT_LEN-1, BATCH, HIDDEN)
    jax.block_until_ready(outs[1]['std'])    # attns   (TGT_LEN-1, BATCH, SRC_LEN)

    assert outs[0].shape == (TGT_LEN - 1, BATCH, HIDDEN)
    assert outs[1]['std'].shape == (TGT_LEN - 1, BATCH, SRC_LEN)
    assert outs[2].shape == (BATCH, HIDDEN)                       # enc_state
    assert outs[3].shape == (BATCH, HIDDEN)                       # dec_state
    assert len(outs[4]) == LAYERS and outs[4][0].shape == (BATCH, SRC_LEN, HIDDEN)
    assert len(outs[6]) == 1 and outs[6][0].shape == (TGT_LEN - 1, BATCH, SRC_LEN)
    assert bool(jnp.all(jnp.isfinite(outs[0])))

    # Reduced-writeback path (final layer only, no raw scores) — exercises the
    # gated MLP output and the emit_raw=False attention variant.
    outs2 = nmt_forward(params, src, tgt, lengths,
                        need_unnormalized_attns=False, need_intermediates=False)
    jax.block_until_ready(outs2[0])
    assert outs2[0].shape == (TGT_LEN - 1, BATCH, HIDDEN)
    assert len(outs2[4]) == 1 and len(outs2[6]) == 0

    print("KERNEL_OK")
</pallas_src>

<mosaic_0001>
module attributes {stable_mosaic.version = 11 : i64} {
  func.func @_mlp_stack_kernel(%arg0: i32, %arg1: i32, %arg2: memref<16x128xbf16, #tpu.memory_space<vmem>>, %arg3: memref<2x128x128xbf16, #tpu.memory_space<vmem>>, %arg4: memref<2x1x128xf32, #tpu.memory_space<vmem>>, %arg5: memref<1x16x128xbf16, #tpu.memory_space<vmem>>, %arg6: memref<16x128xbf16, #tpu.memory_space<vmem>>) attributes {dimension_semantics = [#tpu.dimension_semantics<parallel>, #tpu.dimension_semantics<arbitrary>], iteration_bounds = array<i64: 1, 2>, scalar_prefetch = 0 : i64, scratch_operands = 1 : i64, tpu.core_type = #tpu.core_type<tc>, window_params = [{transform_indices = @transform_0, window_bounds = array<i64: 16, 128>}, {pipeline_mode = #tpu.pipeline_mode<synchronous>, transform_indices = @transform_1, window_bounds = array<i64: 2, 128, 128>}, {pipeline_mode = #tpu.pipeline_mode<synchronous>, transform_indices = @transform_2, window_bounds = array<i64: 2, 1, 128>}, {transform_indices = @transform_3, window_bounds = array<i64: 1, 16, 128>}]} {
    %c0_i32 = arith.constant 0 : i32
    %0 = arith.cmpi eq, %arg1, %c0_i32 : i32
    %1 = arith.extui %0 : i1 to i32
    %c0_i32_0 = arith.constant 0 : i32
    %2 = arith.cmpi ne, %1, %c0_i32_0 : i32
    scf.if %2 {
      %c0_11 = arith.constant 0 : index
      %c0_12 = arith.constant 0 : index
      %19 = vector.load %arg2[%c0_11, %c0_12] : memref<16x128xbf16, #tpu.memory_space<vmem>>, vector<16x128xbf16>
      %c0_13 = arith.constant 0 : index
      %c0_14 = arith.constant 0 : index
      %20 = vector.load %arg6[%c0_13, %c0_14] : memref<16x128xbf16, #tpu.memory_space<vmem>>, vector<16x128xbf16>
      tpu.vector_store %arg6[%c0_13, %c0_14], %19 {strides = array<i32>} : memref<16x128xbf16, #tpu.memory_space<vmem>>, vector<16x128xbf16>,
    } else {
    }
    %3 = arith.index_cast %arg1 : i32 to index
    %c0 = arith.constant 0 : index
    %c0_1 = arith.constant 0 : index
    %4 = vector.load %arg3[%3, %c0, %c0_1] : memref<2x128x128xbf16, #tpu.memory_space<vmem>>, vector<1x128x128xbf16>
    %5 = vector.shape_cast %4 : vector<1x128x128xbf16> to vector<128x128xbf16>
    %6 = arith.index_cast %arg1 : i32 to index
    %c0_2 = arith.constant 0 : index
    %c0_3 = arith.constant 0 : index
    %7 = vector.load %arg4[%6, %c0_2, %c0_3] : memref<2x1x128xf32, #tpu.memory_space<vmem>>, vector<1x1x128xf32>
    %8 = vector.shape_cast %7 : vector<1x1x128xf32> to vector<1x128xf32>
    %c0_4 = arith.constant 0 : index
    %c0_5 = arith.constant 0 : index
    %9 = vector.load %arg6[%c0_4, %c0_5] : memref<16x128xbf16, #tpu.memory_space<vmem>>, vector<16x128xbf16>
    %cst = arith.constant dense<0.000000e+00> : vector<16x128xf32>
    %10 = tpu.matmul %9, %5, %cst {dimension_numbers = #tpu.dot_dimension_numbers<[1], [0], [0], [1], [0, 0, 1, 1], [], []>} : vector<16x128xbf16>, vector<128x128xbf16>, vector<16x128xf32> -> vector<16x128xf32>
    %11 = vector.broadcast %8 : vector<1x128xf32> to vector<16x128xf32>
    %12 = arith.addf %10, %11 : vector<16x128xf32>
    %13 = math.tanh %12 : vector<16x128xf32>
    %14 = arith.truncf %13 : vector<16x128xf32> to vector<16x128xbf16>
    %c0_6 = arith.constant 0 : index
    %c0_7 = arith.constant 0 : index
    %15 = vector.load %arg6[%c0_6, %c0_7] : memref<16x128xbf16, #tpu.memory_space<vmem>>, vector<16x128xbf16>
    tpu.vector_store %arg6[%c0_6, %c0_7], %14 {strides = array<i32>} : memref<16x128xbf16, #tpu.memory_space<vmem>>, vector<16x128xbf16>,
    %c0_8 = arith.constant 0 : index
    %c0_9 = arith.constant 0 : index
    %c0_10 = arith.constant 0 : index
    %16 = vector.load %arg5[%c0_8, %c0_9, %c0_10] : memref<1x16x128xbf16, #tpu.memory_space<vmem>>, vector<1x16x128xbf16>
    %17 = vector.shape_cast %16 : vector<1x16x128xbf16> to vector<16x128xbf16>
    %18 = vector.shape_cast %14 : vector<16x128xbf16> to vector<1x16x128xbf16>
    tpu.vector_store %arg5[%c0_8, %c0_9, %c0_10], %18 {strides = array<i32>} : memref<1x16x128xbf16, #tpu.memory_space<vmem>>, vector<1x16x128xbf16>,
    return
  }
  func.func @transform_0(%arg0: i32, %arg1: i32) -> (i32, i32) {
    %c0_i32 = arith.constant 0 : i32
    %c0_i32_0 = arith.constant 0 : i32
    return %arg0, %c0_i32 : i32, i32
  }
  func.func @transform_1(%arg0: i32, %arg1: i32) -> (i32, i32, i32) {
    %c0_i32 = arith.constant 0 : i32
    %c0_i32_0 = arith.constant 0 : i32
    %c0_i32_1 = arith.constant 0 : i32
    %c0_i32_2 = arith.constant 0 : i32
    return %c0_i32, %c0_i32_0, %c0_i32_1 : i32, i32, i32
  }
  func.func @transform_2(%arg0: i32, %arg1: i32) -> (i32, i32, i32) {
    %c0_i32 = arith.constant 0 : i32
    %c0_i32_0 = arith.constant 0 : i32
    %c0_i32_1 = arith.constant 0 : i32
    %c0_i32_2 = arith.constant 0 : i32
    return %c0_i32, %c0_i32_0, %c0_i32_1 : i32, i32, i32
  }
  func.func @transform_3(%arg0: i32, %arg1: i32) -> (i32, i32, i32) {
    %c0_i32 = arith.constant 0 : i32
    %c0_i32_0 = arith.constant 0 : i32
    return %arg1, %arg0, %c0_i32 : i32, i32, i32
  }
}

</mosaic_0001>

<llo_original>
// kernel: tpu_custom_call.1
$region0: #{tpu_custom_call.1}
  #allocation0 [shape = 'u32[]', space=smem, size = 0x4, offset = 0x4, fixed_abs, tag = 'smem constant byte address 0x4 - core index']
  #allocation1 [shape = 'u32[72,128]{1,0:T(1,128)}', space=vmem, size = 0x9000, scoped, tag = 'internal scratch']
  #allocation2 [shape = 'bf16[16,128]{1,0:T(8,128)(2,1)}', space=vmem, size = 0x1000, scoped, tag = 'scratch operand']
  %s0 = inlined_call_operand.hbm [shape: bf16[16,128], index: 0, kind: input, shape index: {}]
  %s1 = inlined_call_operand.hbm [shape: bf16[2,128,128], index: 1, kind: input, shape index: {}]
  %s2 = inlined_call_operand.hbm [shape: f32[2,1,128], index: 2, kind: input, shape index: {}]
  %s3 = inlined_call_operand.hbm [shape: bf16[2,16,128], index: 3, kind: output, shape index: {}]
  %s4 = sld [smem:[#allocation0]]
  $region61: #{tpu_custom_call.1} parent=0
    _
  %s6 = ssub.s32 1, %s4
  %s7 = scalar_select 0, %s6, %s4
  $region1: #{tpu_custom_call.1} parent=0
    #allocation3 [shape = 'u8[4096]{0}', space=vmem, size = 0x1000, scoped, tag = 'input window, operand 0, single buffered']
    #allocation4 [shape = 's32[2]{0}', space=sflag, size = 0x8, scoped, tag = 'scoped memory for tpu_custom_call.1']
    #allocation5 [shape = 's32[2]{0}', space=sflag, size = 0x8, scoped, tag = 'scoped memory for tpu_custom_call.1']
    #allocation6 [shape = 'u8[65536]{0}', space=vmem, size = 0x10000, scoped, tag = 'input window, operand 1, single buffered']
    #allocation7 [shape = 's32[1]{0}', space=sflag, size = 0x4, scoped, tag = 'scoped memory for tpu_custom_call.1']
    #allocation8 [shape = 'u8[1024]{0}', space=vmem, size = 0x400, scoped, tag = 'input window, operand 2, single buffered']
    #allocation9 [shape = 'u8[8192]{0}', space=vmem, size = 0x2000, scoped, tag = 'output window, operand 0']
    %8 = vsyncpa [#allocation4], 0
    %9 = vsyncpa [#allocation7], 0
    %10 = vsyncpa [#allocation5], 0
    %s11 = scalar_lea.sflag [#allocation5], 1
    %12 = vsyncpa %s11, 0
    loop: start=0, step=1, limit=4
    $region2: #{tpu_custom_call.1} parent=1 // loop_pre_header
      _
    $region3: #{tpu_custom_call.1} parent=1 // loop_header
      %s14 = sphi 0, %s18
      %p15 = scmp.ge.s32.totalorder %s14, 4
      %s21 = sphi 0, %s33
      %s22 = sphi 0, %s29
      %s23 = sphi 0, %s21
      %s24 = sphi 0, %s22
      %s25 = sphi 0, %s23
      %s26 = sphi 0, %s24
      %s36 = sphi 0, %s38
      %s39 = sphi 0, %s36
      %s40 = sphi 0, %s39
      %s56 = sphi 0, %s40
      %s60 = sphi 0, %s60
      %s62 = sphi 0, %s60
      %s63 = sphi 0, %s62
      %s77 = sphi 0, %s63
      %s81 = sphi 0, %s81
      %s83 = sphi 0, %s81
      %s84 = sphi 0, %s83
      %s98 = sphi 0, %s84
      %s106 = sphi 0, %s108
      %s109 = sphi 0, %s106
      %s110 = sphi 0, %s109
      %s126 = sphi 0, %s110
    $region4: #{tpu_custom_call.1} parent=1 // loop_header_branch
      %17 = sbr.rel (%p15) target = $region8
    $region5: #{tpu_custom_call.1} parent=1 // loop_body
      %s19 = ssub.s32 %s14, 1
      %s20 = ssub.s32 %s14, 2
      %s27 = sadd.s32 1, %s22
      %p28 = scmp.ge.s32.totalorder %s27, 2
      %s29 = scalar_select %p28, 0, %s27
      %s30 = sadd.s32 1, %s21
      %s31 = scalar_select %p28, %s30, %s21
      %p32 = scmp.ge.s32.totalorder %s31, 1
      %s33 = scalar_select %p32, 0, %s31
      %s34 = ssub.s32 %s21, %s33
      %p35 = scmp.eq.s32.totalorder %s34, 0
      %s37 = sadd.s32 %s36, 1
      %s38 = scalar_select %p35, %s36, %s37
      %p41 = pneg %p35
      %p42 = scmp.eq.s32.totalorder %s14, 1
      %p43 = por %p41, %p42
      %p44 = scmp.ne.s32.totalorder %s36, %s39
      %p45 = scmp.eq.s32.totalorder %s14, 0
      %p46 = por %p44, %p45
      %p47 = scmp.ne.s32.totalorder %s36, %s39
      %p48 = scmp.eq.s32.totalorder %s19, 1
      %p49 = por %p47, %p48
      %p50 = scmp.ne.s32.totalorder %s39, %s40
      %p51 = scmp.eq.s32.totalorder %s19, 0
      %p52 = por %p50, %p51
      %p53 = scmp.ne.s32.totalorder %s39, %s40
      %p54 = scmp.eq.s32.totalorder %s20, 1
      %p55 = por %p53, %p54
      %p57 = scmp.ne.s32.totalorder %s40, %s56
      %p58 = scmp.eq.s32.totalorder %s20, 0
      %p59 = por %p57, %p58
      %s61 = sadd.s32 %s60, 1
      %p64 = scmp.eq.s32.totalorder %s14, 1
      %p65 = scmp.ne.s32.totalorder %s60, %s62
      %p66 = scmp.eq.s32.totalorder %s14, 0
      %p67 = por %p65, %p66
      %p68 = scmp.ne.s32.totalorder %s60, %s62
      %p69 = scmp.eq.s32.totalorder %s19, 1
      %p70 = por %p68, %p69
      %p71 = scmp.ne.s32.totalorder %s62, %s63
      %p72 = scmp.eq.s32.totalorder %s19, 0
      %p73 = por %p71, %p72
      %p74 = scmp.ne.s32.totalorder %s62, %s63
      %p75 = scmp.eq.s32.totalorder %s20, 1
      %p76 = por %p74, %p75
      %p78 = scmp.ne.s32.totalorder %s63, %s77
      %p79 = scmp.eq.s32.totalorder %s20, 0
      %p80 = por %p78, %p79
      %s82 = sadd.s32 %s81, 1
      %p85 = scmp.eq.s32.totalorder %s14, 1
      %p86 = scmp.ne.s32.totalorder %s81, %s83
      %p87 = scmp.eq.s32.totalorder %s14, 0
      %p88 = por %p86, %p87
      %p89 = scmp.ne.s32.totalorder %s81, %s83
      %p90 = scmp.eq.s32.totalorder %s19, 1
      %p91 = por %p89, %p90
      %p92 = scmp.ne.s32.totalorder %s83, %s84
      %p93 = scmp.eq.s32.totalorder %s19, 0
      %p94 = por %p92, %p93
      %p95 = scmp.ne.s32.totalorder %s83, %s84
      %p96 = scmp.eq.s32.totalorder %s20, 1
      %p97 = por %p95, %p96
      %p99 = scmp.ne.s32.totalorder %s84, %s98
      %p100 = scmp.eq.s32.totalorder %s20, 0
      %p101 = por %p99, %p100
      %s102 = ssub.s32 %s22, %s29
      %s103 = ssub.s32 %s21, %s33
      %s104 = sor.u32 %s102, %s103
      %p105 = scmp.eq.s32.totalorder %s104, 0
      %s107 = sadd.s32 %s106, 1
      %s108 = scalar_select %p105, %s106, %s107
      %p111 = pneg %p105
      %p112 = scmp.eq.s32.totalorder %s14, 1
      %p113 = por %p111, %p112
      %p114 = scmp.ne.s32.totalorder %s106, %s109
      %p115 = scmp.eq.s32.totalorder %s14, 0
      %p116 = por %p114, %p115
      %p117 = scmp.ne.s32.totalorder %s106, %s109
      %p118 = scmp.eq.s32.totalorder %s19, 1
      %p119 = por %p117, %p118
      %p120 = scmp.ne.s32.totalorder %s109, %s110
      %p121 = scmp.eq.s32.totalorder %s19, 0
      %p122 = por %p120, %p121
      %p123 = scmp.ne.s32.totalorder %s109, %s110
      %p124 = scmp.eq.s32.totalorder %s20, 1
      %p125 = por %p123, %p124
      %p127 = scmp.ne.s32.totalorder %s110, %s126
      %p128 = scmp.eq.s32.totalorder %s20, 0
      %p129 = por %p127, %p128
      %p130 = scmp.le.s32.totalorder 1, %s14
      %p131 = scmp.lt.s32.totalorder %s14, 3
      %p132 = pnand %p130, %p131
      %p133 = pneg %p132
      // Predicated region
      $region9: #{tpu_custom_call.1} parent=5 // pred_check
        _
      $region10: #{tpu_custom_call.1} parent=5 // pred_check_branch
        %135 = sbr.rel (%p132) target = $region12
      $region11: #{tpu_custom_call.1} parent=5 // pred_region
        %s136 = ssub.s32 %s14, 1
        // Predicated region
        $region13: #{tpu_custom_call.1} parent=11 // pred_check
          %p137 = pneg %p52
        $region14: #{tpu_custom_call.1} parent=11 // pred_check_branch
          %139 = sbr.rel (%p137) target = $region16
        $region15: #{tpu_custom_call.1} parent=11 // pred_region
          %s140 = smul.u32 2, %s23
          %142 = vsyncadd [#allocation4], 0
          %s143 = smul.addr %s140, 4
          %s144 = scalar_lea.hbm %s0, %s143
          %s145 = sshll.u32 %s144, 4
          %s146 = int_to_ptr.hbm [resolvable:$true] %s145
          %s147 = sshll.u32 [#allocation3], 4
          %s148 = int_to_ptr.vmem [resolvable:$true] %s147
          %153 = dma.hbm_to_vmem [thread:$0]  %s146, 128, %s148, [#allocation4], 64, 64, 4
        $region16: #{tpu_custom_call.1} parent=11 // pred_fallthru
          _
        // Predicated region
        $region17: #{tpu_custom_call.1} parent=11 // pred_check
          %p154 = pneg %p73
        $region18: #{tpu_custom_call.1} parent=11 // pred_check_branch
          %156 = sbr.rel (%p154) target = $region20
        $region19: #{tpu_custom_call.1} parent=11 // pred_region
          %158 = vsyncadd [#allocation7], 0
          %s159 = sshll.u32 %s1, 4
          %s160 = int_to_ptr.hbm [resolvable:$true] %s159
          %s161 = sshll.u32 [#allocation6], 4
          %s162 = int_to_ptr.vmem [resolvable:$true] %s161
          %167 = dma.hbm_to_vmem [thread:$0]  %s160, 2048, %s162, [#allocation7], 64, 64, 4
        $region20: #{tpu_custom_call.1} parent=11 // pred_fallthru
          _
        // Predicated region
        $region21: #{tpu_custom_call.1} parent=11 // pred_check
          %p168 = pneg %p94
        $region22: #{tpu_custom_call.1} parent=11 // pred_check_branch
          %170 = sbr.rel (%p168) target = $region24
        $region23: #{tpu_custom_call.1} parent=11 // pred_region
          %172 = vsyncadd [#allocation7], 0
          %s173 = sshll.u32 %s2, 4
          %s174 = int_to_ptr.hbm [resolvable:$true] %s173
          %s175 = sshll.u32 [#allocation8], 4
          %s176 = int_to_ptr.vmem [resolvable:$true] %s175
          %181 = dma.hbm_to_vmem [thread:$0]  %s174, 32, %s176, [#allocation7], 16, 16, 1
        $region24: #{tpu_custom_call.1} parent=11 // pred_fallthru
          _
      $region12: #{tpu_custom_call.1} parent=5 // pred_fallthru
        _
      %p182 = scmp.lt.s32.totalorder %s14, 2
      // Predicated region
      $region25: #{tpu_custom_call.1} parent=5 // pred_check
        %p183 = pneg %p182
      $region26: #{tpu_custom_call.1} parent=5 // pred_check_branch
        %185 = sbr.rel (%p183) target = $region28
      $region27: #{tpu_custom_call.1} parent=5 // pred_region
        _
      $region28: #{tpu_custom_call.1} parent=5 // pred_fallthru
        _
      %p186 = scmp.le.s32.totalorder 1, %s14
      %p187 = scmp.lt.s32.totalorder %s14, 3
      %p188 = pnand %p186, %p187
      %p189 = pneg %p188
      // Predicated region
      $region29: #{tpu_custom_call.1} parent=5 // pred_check
        _
      $region30: #{tpu_custom_call.1} parent=5 // pred_check_branch
        %191 = sbr.rel (%p188) target = $region32
      $region31: #{tpu_custom_call.1} parent=5 // pred_region
        %s192 = ssub.s32 %s14, 1
        // Predicated region
        $region33: #{tpu_custom_call.1} parent=31 // pred_check
          %p193 = pneg %p52
        $region34: #{tpu_custom_call.1} parent=31 // pred_check_branch
          %195 = sbr.rel (%p193) target = $region36
        $region35: #{tpu_custom_call.1} parent=31 // pred_region
          %197 = dma.done [#allocation4], 128
        $region36: #{tpu_custom_call.1} parent=31 // pred_fallthru
          _
        // Predicated region
        $region37: #{tpu_custom_call.1} parent=31 // pred_check
          %p198 = pneg %p73
        $region38: #{tpu_custom_call.1} parent=31 // pred_check_branch
          %200 = sbr.rel (%p198) target = $region40
        $region39: #{tpu_custom_call.1} parent=31 // pred_region
          %202 = dma.done [#allocation7], 2048
        $region40: #{tpu_custom_call.1} parent=31 // pred_fallthru
          _
        // Predicated region
        $region41: #{tpu_custom_call.1} parent=31 // pred_check
          %p203 = pneg %p94
        $region42: #{tpu_custom_call.1} parent=31 // pred_check_branch
          %205 = sbr.rel (%p203) target = $region44
        $region43: #{tpu_custom_call.1} parent=31 // pred_region
          %207 = dma.done [#allocation7], 32
        $region44: #{tpu_custom_call.1} parent=31 // pred_fallthru
          _
        %p208 = pneg %p52
        %p209 = pneg %p49
        %p210 = pneg %p73
        %p211 = pneg %p70
        %p212 = pneg %p94
        %p213 = pneg %p91
        %p214 = pneg %p122
        %p215 = pneg %p119
        %s216 = sand.u32 %s109, 1
        %s217 = scalar_lea.sflag [#allocation5], %s216
        %s218 = sand.u32 %s109, 1
        %s219 = smul.addr %s218, 8
        %s220 = scalar_lea.vmem [#allocation9], %s219
        %s221 = smul.u32 2, %s23
        %s222 = smul.u32 2, %s23
        %p223 = scmp.eq.s32.totalorder %s24, 0
        // Predicated region
        $region45: #{tpu_custom_call.1} parent=31 // pred_check
          %p224 = pneg %p223
        $region46: #{tpu_custom_call.1} parent=31 // pred_check_branch
          %226 = sbr.rel (%p224) target = $region48
        $region47: #{tpu_custom_call.1} parent=31 // pred_region
          %v227 = vld [vmem:[#allocation3] sm:$0xf]
          %v228 = vld [vmem:[#allocation3 + $0x4] sm:$0xf]
          %229 = vst [vmem:[#allocation2] sm:$0xf] %v227
          %230 = vst [vmem:[#allocation2 + $0x4] sm:$0xf] %v228
        $region48: #{tpu_custom_call.1} parent=31 // pred_fallthru
          _
        %s231 = smul.u32 %s24, 16
        %s232 = smul.addr %s231, 4
        %s233 = scalar_lea.vmem [#allocation6], %s232
        %v234 = vld [vmem:[%s233] sm:$0xf]
        %v235 = vld [vmem:[%s233 + $0x4] sm:$0xf]
        %v236 = vld [vmem:[%s233 + $0x8] sm:$0xf]
        %v237 = vld [vmem:[%s233 + $0xc] sm:$0xf]
        %v238 = vld [vmem:[%s233 + $0x10] sm:$0xf]
        %v239 = vld [vmem:[%s233 + $0x14] sm:$0xf]
        %v240 = vld [vmem:[%s233 + $0x18] sm:$0xf]
        %v241 = vld [vmem:[%s233 + $0x1c] sm:$0xf]
        %v242 = vld [vmem:[%s233 + $0x20] sm:$0xf]
        %v243 = vld [vmem:[%s233 + $0x24] sm:$0xf]
        %v244 = vld [vmem:[%s233 + $0x28] sm:$0xf]
        %v245 = vld [vmem:[%s233 + $0x2c] sm:$0xf]
        %v246 = vld [vmem:[%s233 + $0x30] sm:$0xf]
        %v247 = vld [vmem:[%s233 + $0x34] sm:$0xf]
        %v248 = vld [vmem:[%s233 + $0x38] sm:$0xf]
        %v249 = vld [vmem:[%s233 + $0x3c] sm:$0xf]
        %s250 = scalar_lea.vmem [#allocation8], %s24
        %v251 = vld [vmem:[%s250] sm:$0x1]
        %v252 = vld [vmem:[#allocation2] sm:$0xf]
        %v253 = vld [vmem:[#allocation2 + $0x4] sm:$0xf]
        %v255 = vperm.slane %v251, 0
        %v259 = vunpack.c.l.b16 %v252
        %v260 = vunpack.c.l.b16 %v253
        %v261 = vpack.c.b16 %v260, %v259
        %v279 = vunpack.c.l.b16 %v234
        %v280 = vunpack.c.l.b16 %v235
        %v281 = vunpack.c.l.b16 %v236
        %v282 = vunpack.c.l.b16 %v237
        %v283 = vunpack.c.l.b16 %v238
        %v284 = vunpack.c.l.b16 %v239
        %v285 = vunpack.c.l.b16 %v240
        %v286 = vunpack.c.l.b16 %v241
        %v287 = vunpack.c.l.b16 %v242
        %v288 = vunpack.c.l.b16 %v243
        %v289 = vunpack.c.l.b16 %v244
        %v290 = vunpack.c.l.b16 %v245
        %v291 = vunpack.c.l.b16 %v246
        %v292 = vunpack.c.l.b16 %v247
        %v293 = vunpack.c.l.b16 %v248
        %v294 = vunpack.c.l.b16 %v249
        %v295 = vpack.c.b16 %v280, %v279
        %v296 = vpack.c.b16 %v282, %v281
        %v297 = vpack.c.b16 %v284, %v283
        %v298 = vpack.c.b16 %v286, %v285
        %v299 = vpack.c.b16 %v288, %v287
        %v300 = vpack.c.b16 %v290, %v289
        %v301 = vpack.c.b16 %v292, %v291
        %v302 = vpack.c.b16 %v294, %v293
        %311 = vmatpush.bf16.msra.mxu0 %v302
        %312 = vmatpush.bf16.msra.mxu0 %v301
        %313 = vmatpush.bf16.msra.mxu0 %v300
        %314 = vmatpush.bf16.msra.mxu0 %v299
        %315 = vmatpush.bf16.msra.mxu0 %v298
        %316 = vmatpush.bf16.msra.mxu0 %v297
        %317 = vmatpush.bf16.msra.mxu0 %v296
        %318 = vmatpush.bf16.msra.mxu0 %v295
        %319 = vmatmul.bf16.gmra.mxu0 %v261
        %v320 = vpop.f32.mrf.mxu0
        %v321 = vadd.f32 %v255, %v320
        %v322 = vpop.f32.mrf.mxu0
        %v323 = vadd.f32 %v255, %v322
        %324 = vdwg.mxu0
        %v325 = vtanh.pop %v321
        %v326 = vtanh.pop %v323
        %v327 = vpack.c.bf16 %v325, %v325
        %v328 = vpack.c.bf16 %v326, %v326
        %329 = vst [vmem:[#allocation2] sm:$0xf] %v327
        %330 = vst [vmem:[#allocation2 + $0x4] sm:$0xf] %v328
        %331 = vst [vmem:[%s220] sm:$0xf] %v327
        %332 = vst [vmem:[%s220 + $0x4] sm:$0xf] %v328
        %s333 = sand.u32 %s109, 1
        %s334 = scalar_lea.sflag [#allocation5], %s333
        %s335 = sand.u32 %s109, 1
        %s336 = smul.addr %s335, 8
        %s337 = scalar_lea.vmem [#allocation9], %s336
        // Predicated region
        $region49: #{tpu_custom_call.1} parent=31 // pred_check
          %p338 = pneg %p119
        $region50: #{tpu_custom_call.1} parent=31 // pred_check_branch
          %340 = sbr.rel (%p338) target = $region52
        $region51: #{tpu_custom_call.1} parent=31 // pred_region
          %s341 = smul.u32 2, %s23
          %343 = vsyncadd %s334, 0
          %s344 = smul.addr %s24, 2
          %s345 = sadd.s32 %s341, %s344
          %s346 = smul.addr %s345, 4
          %s347 = scalar_lea.hbm %s3, %s346
          %s348 = sshll.u32 %s337, 4
          %s349 = int_to_ptr.vmem [resolvable:$true] %s348
          %s350 = sshll.u32 %s347, 4
          %s351 = int_to_ptr.hbm [resolvable:$true] %s350
          %356 = dma.vmem_to_hbm [thread:$0]  %s349, 128, %s351, %s334, 64, 64, 4
        $region52: #{tpu_custom_call.1} parent=31 // pred_fallthru
          _
      $region32: #{tpu_custom_call.1} parent=5 // pred_fallthru
        _
      %p357 = scmp.le.s32.totalorder 2, %s14
      // Predicated region
      $region53: #{tpu_custom_call.1} parent=5 // pred_check
        %p358 = pneg %p357
      $region54: #{tpu_custom_call.1} parent=5 // pred_check_branch
        %360 = sbr.rel (%p358) target = $region56
      $region55: #{tpu_custom_call.1} parent=5 // pred_region
        %s361 = ssub.s32 %s14, 2
        // Predicated region
        $region57: #{tpu_custom_call.1} parent=55 // pred_check
          %p362 = pneg %p125
        $region58: #{tpu_custom_call.1} parent=55 // pred_check_branch
          %364 = sbr.rel (%p362) target = $region60
        $region59: #{tpu_custom_call.1} parent=55 // pred_region
          %s365 = sand.u32 %s110, 1
          %s366 = scalar_lea.sflag [#allocation5], %s365
          %s367 = sand.u32 %s110, 1
          %s368 = smul.addr %s367, 8
          %s369 = scalar_lea.vmem [#allocation9], %s368
          %371 = dma.done %s366, 128
        $region60: #{tpu_custom_call.1} parent=55 // pred_fallthru
          _
      $region56: #{tpu_custom_call.1} parent=5 // pred_fallthru
        _
    $region6: #{tpu_custom_call.1} parent=1 // loop_footer
      %s18 = sadd.s32 1, %s14
    $region7: #{tpu_custom_call.1} parent=1 // loop_footer_branch
      %13 = sbr.rel target = $region3
    $region8: #{tpu_custom_call.1} parent=1 // loop_exit
      _
    %372 = vsyncpa [#allocation4], 1
    %s373 = scalar_lea.sflag [#allocation4], 1
    %374 = vsyncpa %s373, 1
    %375 = vsyncpa [#allocation7], 1
    %376 = vsyncpa [#allocation5], 1
    %s377 = scalar_lea.sflag [#allocation5], 1
    %378 = vsyncpa %s377, 1

</llo_original>
